<compile_context>
chip_gen: v6e
topology: v6e:2x2x1
jax: 0.10.0
libtpu: 0.0.40
codegen_flags: <defaults>
</compile_context>

<pallas_src>
import functools

import jax
import jax.numpy as jnp
from jax import lax
from jax.experimental import pallas as pl
from jax.experimental.pallas import tpu as pltpu

MXU_DTYPE = jnp.bfloat16   # matmul-operand dtype; accumulation is always f32


# ----------------------------- kernels ------------------------------------ #

def qkv_proj_kernel(x_ref, w_ref, qkv_ref):
    """Fused q/k/v projection: one (t_t, C) x (C, 3*hs) matmul, one lane-dense store."""
    qkv_ref[0] = jnp.dot(x_ref[0], w_ref[...],
                         preferred_element_type=jnp.float32).astype(qkv_ref.dtype)


def flash_head_kernel(q_ref, k_ref, v_ref, o_ref, m_sc, l_sc, acc_sc, *, t_q, t_kv):
    """Causal attention for one (batch, q-tile): online softmax over KV tiles."""
    qi = pl.program_id(1)
    ki = pl.program_id(2)

    @pl.when(ki == 0)
    def _():
        m_sc[...] = jnp.full_like(m_sc, -1e30)
        l_sc[...] = jnp.zeros_like(l_sc)
        acc_sc[...] = jnp.zeros_like(acc_sc)

    q_start = qi * t_q
    k_start = ki * t_kv

    def accumulate(masked):
        # Scale is pre-folded into wq, so scores come straight off the MXU.
        # Contract the last dims of q and k directly: no k transpose materialized.
        s = lax.dot_general(q_ref[0], k_ref[0], (((1,), (1,)), ((), ())),
                            preferred_element_type=jnp.float32)          # (t_q, t_kv) f32
        if masked:
            row = q_start + lax.broadcasted_iota(jnp.int32, (t_q, t_kv), 0)
            col = k_start + lax.broadcasted_iota(jnp.int32, (t_q, t_kv), 1)
            # Finite fill (not -inf): rows fully masked inside a tile stay NaN-free.
            s = jnp.where(row >= col, s, -1e30)
        m_prev = m_sc[...]
        m_new = jnp.maximum(m_prev, jnp.max(s, axis=-1, keepdims=True))
        alpha = jnp.exp(m_prev - m_new)
        p = jnp.exp(s - m_new)                                            # f32 (EUP)
        l_sc[...] = alpha * l_sc[...] + jnp.sum(p, axis=-1, keepdims=True)
        acc_sc[...] = alpha * acc_sc[...] + jnp.dot(
            p.astype(v_ref.dtype), v_ref[0], preferred_element_type=jnp.float32)
        m_sc[...] = m_new

    # Fully below the diagonal: every (row, col) in the tile is valid -> no masking work.
    below_diag = q_start >= k_start + (t_kv - 1)
    # Straddling the diagonal: build the causal mask.  Tiles strictly above are skipped
    # entirely (and their K/V DMAs are avoided by the clamped index_maps).
    straddle = jnp.logical_and(q_start + (t_q - 1) >= k_start,
                               jnp.logical_not(below_diag))

    @pl.when(below_diag)
    def _():
        accumulate(masked=False)

    @pl.when(straddle)
    def _():
        accumulate(masked=True)

    @pl.when(ki == pl.num_programs(2) - 1)
    def _():
        # EUP approximate reciprocal: the divide leaves the VALU critical path.
        o_ref[0] = (acc_sc[...] * pl.reciprocal(l_sc[...], approx=True)
                    ).astype(o_ref.dtype)


# ----------------------------- wrapper ------------------------------------- #

def head_forward(x, wq, wk, wv, *, q_tile=None, kv_tile=None, t_tile=None):
    """Pallas forward of Head: softmax(causal_mask(q k^T * C**-0.5)) @ v.

    Weights are (n_embd, head_size) so y = x @ W.  Dropout is identity (inference).
    """
    B, T, C = x.shape
    hs = wq.shape[1]
    scale = float(C) ** -0.5   # NOTE: matches the torch code (n_embd**-0.5, not hs**-0.5)

    q_tile = q_tile or min(T, 256)
    kv_tile = kv_tile or min(T, 256)
    t_tile = t_tile or min(T, 512)
    assert T % q_tile == 0 and T % kv_tile == 0 and T % t_tile == 0

    # ---- fused q/k/v projection (one matmul, scale folded into wq) --------- #
    wqkv = jnp.concatenate([wq * scale, wk, wv], axis=1).astype(MXU_DTYPE)    # (C, 3*hs)
    # NOTE: at large C on v7x, give the invariant weight pipeline_mode=pl.Buffered(1) and
    # set vmem_limit_bytes; unnecessary at these shapes.
    qkv = pl.pallas_call(
        qkv_proj_kernel,
        out_shape=jax.ShapeDtypeStruct((B, T, 3 * hs), MXU_DTYPE),
        grid_spec=pltpu.PrefetchScalarGridSpec(
            num_scalar_prefetch=0,
            grid=(B, T // t_tile),
            in_specs=[pl.BlockSpec((1, t_tile, C), lambda b, t: (b, t, 0)),
                      pl.BlockSpec((C, 3 * hs), lambda b, t: (0, 0))],
            out_specs=pl.BlockSpec((1, t_tile, 3 * hs), lambda b, t: (b, t, 0))),
        compiler_params=pltpu.CompilerParams(
            dimension_semantics=("parallel", "parallel")),
    )(x.astype(MXU_DTYPE), wqkv)

    # ---- causal flash attention (online softmax over KV tiles) ------------- #
    # KV index clamp: grid steps above the causal diagonal return the same block index as
    # the last needed tile, so Pallas issues no new DMA for tiles the kernel will skip.
    def last_needed(qi):
        return (qi * q_tile + q_tile - 1) // kv_tile

    if hs % 128 == 0:
        # Lane-aligned head: read q/k/v straight out of the fused array via last-dim offsets.
        q_in = k_in = v_in = qkv
        q_spec = pl.BlockSpec((1, q_tile, hs), lambda b, qi, ki: (b, qi, 0))
        k_spec = pl.BlockSpec(
            (1, kv_tile, hs),
            lambda b, qi, ki: (b, jnp.minimum(ki, last_needed(qi)), 1))
        v_spec = pl.BlockSpec(
            (1, kv_tile, hs),
            lambda b, qi, ki: (b, jnp.minimum(ki, last_needed(qi)), 2))
    else:
        # Sub-128-lane head (toy sizes): split once via XLA so every block is full-width.
        q_in, k_in, v_in = qkv[..., :hs], qkv[..., hs:2 * hs], qkv[..., 2 * hs:]
        q_spec = pl.BlockSpec((1, q_tile, hs), lambda b, qi, ki: (b, qi, 0))
        k_spec = pl.BlockSpec(
            (1, kv_tile, hs),
            lambda b, qi, ki: (b, jnp.minimum(ki, last_needed(qi)), 0))
        v_spec = pl.BlockSpec(
            (1, kv_tile, hs),
            lambda b, qi, ki: (b, jnp.minimum(ki, last_needed(qi)), 0))

    out = pl.pallas_call(
        functools.partial(flash_head_kernel, t_q=q_tile, t_kv=kv_tile),
        out_shape=jax.ShapeDtypeStruct((B, T, hs), x.dtype),
        grid_spec=pltpu.PrefetchScalarGridSpec(
            num_scalar_prefetch=0,
            grid=(B, T // q_tile, T // kv_tile),
            in_specs=[q_spec, k_spec, v_spec],
            out_specs=pl.BlockSpec((1, q_tile, hs), lambda b, qi, ki: (b, qi, 0)),
            scratch_shapes=[pltpu.VMEM((q_tile, 1), jnp.float32),    # running max m
                            pltpu.VMEM((q_tile, 1), jnp.float32),    # running sum l
                            pltpu.VMEM((q_tile, hs), jnp.float32)]), # output accumulator
        compiler_params=pltpu.CompilerParams(
            dimension_semantics=("parallel", "parallel", "arbitrary")),
    )(q_in, k_in, v_in)
    return out


# ----------------------------- reference ----------------------------------- #

def head_reference(x, wq, wk, wv):
    """Pure-JAX f32 reference mirroring the torch module (dropout = identity)."""
    B, T, C = x.shape
    q, k, v = x @ wq, x @ wk, x @ wv
    wei = jnp.einsum("btd,bsd->bts", q, k) * C ** (-0.5)
    mask = jnp.tril(jnp.ones((T, T), dtype=bool))
    wei = jnp.where(mask, wei, -jnp.inf)
    wei = jax.nn.softmax(wei, axis=-1)
    return jnp.einsum("bts,bsd->btd", wei, v)


# ----------------------------- main ----------------------------------------- #

if __name__ == "__main__":
    B, block_size, n_embd, head_size = 2, 16, 32, 16
    # TODO(synk): training-mode dropout (random masking of attention weights) not implemented.

    key = jax.random.PRNGKey(0)
    kx, kq, kk, kv_key = jax.random.split(key, 4)
    x = jax.random.normal(kx, (B, block_size, n_embd), jnp.float32)

    def init_w(k):
        return (jax.random.normal(k, (n_embd, head_size), jnp.float32)
                * n_embd ** -0.5)

    wq, wk, wv = init_w(kq), init_w(kk), init_w(kv_key)

    # Small tiles so the toy shapes exercise the multi-tile online softmax, the
    # diagonal-straddle mask path, and the clamped (no-DMA) causal skip.
    out = head_forward(x, wq, wk, wv, q_tile=8, kv_tile=8, t_tile=8)
    out = jax.block_until_ready(out)

    ref = head_reference(x, wq, wk, wv)
    assert out.shape == (B, block_size, head_size)
    max_err = float(jnp.max(jnp.abs(out - ref)))
    assert jnp.allclose(out, ref, atol=2e-2, rtol=2e-2), (
        f"mismatch vs reference, max abs err {max_err}")

    print("KERNEL_OK")
</pallas_src>

<mosaic_0001>
module attributes {stable_mosaic.version = 11 : i64} {
  func.func @qkv_proj_kernel(%arg0: i32, %arg1: i32, %arg2: memref<1x8x32xbf16, #tpu.memory_space<vmem>>, %arg3: memref<32x48xbf16, #tpu.memory_space<vmem>>, %arg4: memref<1x8x48xbf16, #tpu.memory_space<vmem>>) attributes {dimension_semantics = [#tpu.dimension_semantics<parallel>, #tpu.dimension_semantics<parallel>], iteration_bounds = array<i64: 2, 2>, scalar_prefetch = 0 : i64, scratch_operands = 0 : i64, tpu.core_type = #tpu.core_type<tc>, window_params = [{transform_indices = @transform_0, window_bounds = array<i64: 1, 8, 32>}, {pipeline_mode = #tpu.pipeline_mode<synchronous>, transform_indices = @transform_1, window_bounds = array<i64: 32, 48>}, {transform_indices = @transform_2, window_bounds = array<i64: 1, 8, 48>}]} {
    %c0 = arith.constant 0 : index
    %c0_0 = arith.constant 0 : index
    %c0_1 = arith.constant 0 : index
    %0 = vector.load %arg2[%c0, %c0_0, %c0_1] : memref<1x8x32xbf16, #tpu.memory_space<vmem>>, vector<1x8x32xbf16>
    %1 = vector.shape_cast %0 : vector<1x8x32xbf16> to vector<8x32xbf16>
    %c0_2 = arith.constant 0 : index
    %c0_3 = arith.constant 0 : index
    %2 = vector.load %arg3[%c0_2, %c0_3] : memref<32x48xbf16, #tpu.memory_space<vmem>>, vector<32x48xbf16>
    %cst = arith.constant dense<0.000000e+00> : vector<8x48xf32>
    %3 = tpu.matmul %1, %2, %cst {dimension_numbers = #tpu.dot_dimension_numbers<[1], [0], [0], [1], [0, 0, 1, 1], [], []>} : vector<8x32xbf16>, vector<32x48xbf16>, vector<8x48xf32> -> vector<8x48xf32>
    %4 = arith.truncf %3 : vector<8x48xf32> to vector<8x48xbf16>
    %c0_4 = arith.constant 0 : index
    %c0_5 = arith.constant 0 : index
    %c0_6 = arith.constant 0 : index
    %5 = vector.load %arg4[%c0_4, %c0_5, %c0_6] : memref<1x8x48xbf16, #tpu.memory_space<vmem>>, vector<1x8x48xbf16>
    %6 = vector.shape_cast %5 : vector<1x8x48xbf16> to vector<8x48xbf16>
    %7 = vector.shape_cast %4 : vector<8x48xbf16> to vector<1x8x48xbf16>
    tpu.vector_store %arg4[%c0_4, %c0_5, %c0_6], %7 {strides = array<i32>} : memref<1x8x48xbf16, #tpu.memory_space<vmem>>, vector<1x8x48xbf16>,
    return
  }
  func.func @transform_0(%arg0: i32, %arg1: i32) -> (i32, i32, i32) {
    %c0_i32 = arith.constant 0 : i32
    %c0_i32_0 = arith.constant 0 : i32
    return %arg0, %arg1, %c0_i32 : i32, i32, i32
  }
  func.func @transform_1(%arg0: i32, %arg1: i32) -> (i32, i32) {
    %c0_i32 = arith.constant 0 : i32
    %c0_i32_0 = arith.constant 0 : i32
    %c0_i32_1 = arith.constant 0 : i32
    return %c0_i32, %c0_i32_0 : i32, i32
  }
  func.func @transform_2(%arg0: i32, %arg1: i32) -> (i32, i32, i32) {
    %c0_i32 = arith.constant 0 : i32
    %c0_i32_0 = arith.constant 0 : i32
    return %arg0, %arg1, %c0_i32 : i32, i32, i32
  }
}

</mosaic_0001>

<llo_original>
// kernel: tpu_custom_call.1
$region0: #{tpu_custom_call.1}
  #allocation0 [shape = 'u32[]', space=smem, size = 0x4, offset = 0x4, fixed_abs, tag = 'smem constant byte address 0x4 - core index']
  #allocation1 [shape = 'u32[144,128]{1,0:T(1,128)}', space=vmem, size = 0x12000, scoped, tag = 'internal scratch']
  %s0 = inlined_call_operand.hbm [shape: bf16[2,16,32], index: 0, kind: input, shape index: {}]
  %s1 = inlined_call_operand.hbm [shape: bf16[32,48], index: 1, kind: input, shape index: {}]
  %s2 = inlined_call_operand.hbm [shape: bf16[2,16,48], index: 2, kind: output, shape index: {}]
  %s3 = sld [smem:[#allocation0]]
  $region49: #{tpu_custom_call.1} parent=0
    _
  %s5 = ssub.s32 1, %s3
  %s6 = scalar_select 0, %s5, %s3
  $region1: #{tpu_custom_call.1} parent=0
    #allocation2 [shape = 'u8[4096]{0}', space=vmem, size = 0x1000, scoped, tag = 'input window, operand 0']
    #allocation3 [shape = 's32[2]{0}', space=sflag, size = 0x8, scoped, tag = 'scoped memory for tpu_custom_call.1']
    #allocation4 [shape = 's32[2]{0}', space=sflag, size = 0x8, scoped, tag = 'scoped memory for tpu_custom_call.1']
    #allocation5 [shape = 'u8[8192]{0}', space=vmem, size = 0x2000, scoped, tag = 'input window, operand 1, single buffered']
    #allocation6 [shape = 's32[1]{0}', space=sflag, size = 0x4, scoped, tag = 'scoped memory for tpu_custom_call.1']
    #allocation7 [shape = 'u8[4096]{0}', space=vmem, size = 0x1000, scoped, tag = 'output window, operand 0']
    %7 = vsyncpa [#allocation3], 0
    %s8 = scalar_lea.sflag [#allocation3], 1
    %9 = vsyncpa %s8, 0
    %10 = vsyncpa [#allocation6], 0
    %11 = vsyncpa [#allocation4], 0
    %s12 = scalar_lea.sflag [#allocation4], 1
    %13 = vsyncpa %s12, 0
    loop: start=0, step=1, limit=6
    $region2: #{tpu_custom_call.1} parent=1 // loop_pre_header
      _
    $region3: #{tpu_custom_call.1} parent=1 // loop_header
      %s15 = sphi 0, %s19
      %p16 = scmp.ge.s32.totalorder %s15, 6
      %s22 = sphi 0, %s34
      %s23 = sphi 0, %s30
      %s24 = sphi 0, %s22
      %s25 = sphi 0, %s23
      %s26 = sphi 0, %s24
      %s27 = sphi 0, %s25
      %s39 = sphi 0, %s41
      %s42 = sphi 0, %s39
      %s43 = sphi 0, %s42
      %s59 = sphi 0, %s43
      %s63 = sphi 0, %s63
      %s65 = sphi 0, %s63
      %s66 = sphi 0, %s65
      %s80 = sphi 0, %s66
      %s88 = sphi 0, %s90
      %s91 = sphi 0, %s88
      %s92 = sphi 0, %s91
      %s108 = sphi 0, %s92
    $region4: #{tpu_custom_call.1} parent=1 // loop_header_branch
      %18 = sbr.rel (%p16) target = $region8
    $region5: #{tpu_custom_call.1} parent=1 // loop_body
      %s20 = ssub.s32 %s15, 1
      %s21 = ssub.s32 %s15, 2
      %s28 = sadd.s32 1, %s23
      %p29 = scmp.ge.s32.totalorder %s28, 2
      %s30 = scalar_select %p29, 0, %s28
      %s31 = sadd.s32 1, %s22
      %s32 = scalar_select %p29, %s31, %s22
      %p33 = scmp.ge.s32.totalorder %s32, 2
      %s34 = scalar_select %p33, 0, %s32
      %s35 = ssub.s32 %s22, %s34
      %s36 = ssub.s32 %s23, %s30
      %s37 = sor.u32 %s35, %s36
      %p38 = scmp.eq.s32.totalorder %s37, 0
      %s40 = sadd.s32 %s39, 1
      %s41 = scalar_select %p38, %s39, %s40
      %p44 = pneg %p38
      %p45 = scmp.eq.s32.totalorder %s15, 3
      %p46 = por %p44, %p45
      %p47 = scmp.ne.s32.totalorder %s39, %s42
      %p48 = scmp.eq.s32.totalorder %s15, 0
      %p49 = por %p47, %p48
      %p50 = scmp.ne.s32.totalorder %s39, %s42
      %p51 = scmp.eq.s32.totalorder %s20, 3
      %p52 = por %p50, %p51
      %p53 = scmp.ne.s32.totalorder %s42, %s43
      %p54 = scmp.eq.s32.totalorder %s20, 0
      %p55 = por %p53, %p54
      %p56 = scmp.ne.s32.totalorder %s42, %s43
      %p57 = scmp.eq.s32.totalorder %s21, 3
      %p58 = por %p56, %p57
      %p60 = scmp.ne.s32.totalorder %s43, %s59
      %p61 = scmp.eq.s32.totalorder %s21, 0
      %p62 = por %p60, %p61
      %s64 = sadd.s32 %s63, 1
      %p67 = scmp.eq.s32.totalorder %s15, 3
      %p68 = scmp.ne.s32.totalorder %s63, %s65
      %p69 = scmp.eq.s32.totalorder %s15, 0
      %p70 = por %p68, %p69
      %p71 = scmp.ne.s32.totalorder %s63, %s65
      %p72 = scmp.eq.s32.totalorder %s20, 3
      %p73 = por %p71, %p72
      %p74 = scmp.ne.s32.totalorder %s65, %s66
      %p75 = scmp.eq.s32.totalorder %s20, 0
      %p76 = por %p74, %p75
      %p77 = scmp.ne.s32.totalorder %s65, %s66
      %p78 = scmp.eq.s32.totalorder %s21, 3
      %p79 = por %p77, %p78
      %p81 = scmp.ne.s32.totalorder %s66, %s80
      %p82 = scmp.eq.s32.totalorder %s21, 0
      %p83 = por %p81, %p82
      %s84 = ssub.s32 %s22, %s34
      %s85 = ssub.s32 %s23, %s30
      %s86 = sor.u32 %s84, %s85
      %p87 = scmp.eq.s32.totalorder %s86, 0
      %s89 = sadd.s32 %s88, 1
      %s90 = scalar_select %p87, %s88, %s89
      %p93 = pneg %p87
      %p94 = scmp.eq.s32.totalorder %s15, 3
      %p95 = por %p93, %p94
      %p96 = scmp.ne.s32.totalorder %s88, %s91
      %p97 = scmp.eq.s32.totalorder %s15, 0
      %p98 = por %p96, %p97
      %p99 = scmp.ne.s32.totalorder %s88, %s91
      %p100 = scmp.eq.s32.totalorder %s20, 3
      %p101 = por %p99, %p100
      %p102 = scmp.ne.s32.totalorder %s91, %s92
      %p103 = scmp.eq.s32.totalorder %s20, 0
      %p104 = por %p102, %p103
      %p105 = scmp.ne.s32.totalorder %s91, %s92
      %p106 = scmp.eq.s32.totalorder %s21, 3
      %p107 = por %p105, %p106
      %p109 = scmp.ne.s32.totalorder %s92, %s108
      %p110 = scmp.eq.s32.totalorder %s21, 0
      %p111 = por %p109, %p110
      %p112 = scmp.le.s32.totalorder 1, %s15
      %p113 = scmp.lt.s32.totalorder %s15, 5
      %p114 = pnand %p112, %p113
      %p115 = pneg %p114
      // Predicated region
      $region9: #{tpu_custom_call.1} parent=5 // pred_check
        _
      $region10: #{tpu_custom_call.1} parent=5 // pred_check_branch
        %117 = sbr.rel (%p114) target = $region12
      $region11: #{tpu_custom_call.1} parent=5 // pred_region
        %s118 = ssub.s32 %s15, 1
        // Predicated region
        $region13: #{tpu_custom_call.1} parent=11 // pred_check
          %p119 = pneg %p76
        $region14: #{tpu_custom_call.1} parent=11 // pred_check_branch
          %121 = sbr.rel (%p119) target = $region16
        $region15: #{tpu_custom_call.1} parent=11 // pred_region
          %s123 = ssub.s32 256, 256
          %124 = vsyncadd [#allocation6], %s123
          %s125 = sshll.u32 [#allocation5], 4
          %s126 = int_to_ptr.vmem [resolvable:$true] %s125
          %131 = dma.hbm_to_vmem [thread:$0]  %s1, 256, %s126, [#allocation6], 64, 64, 4
        $region16: #{tpu_custom_call.1} parent=11 // pred_fallthru
          _
      $region12: #{tpu_custom_call.1} parent=5 // pred_fallthru
        _
      %p132 = scmp.lt.s32.totalorder %s15, 4
      // Predicated region
      $region17: #{tpu_custom_call.1} parent=5 // pred_check
        %p133 = pneg %p132
      $region18: #{tpu_custom_call.1} parent=5 // pred_check_branch
        %135 = sbr.rel (%p133) target = $region20
      $region19: #{tpu_custom_call.1} parent=5 // pred_region
        // Predicated region
        $region21: #{tpu_custom_call.1} parent=19 // pred_check
          %p136 = pneg %p49
        $region22: #{tpu_custom_call.1} parent=19 // pred_check_branch
          %138 = sbr.rel (%p136) target = $region24
        $region23: #{tpu_custom_call.1} parent=19 // pred_region
          %s139 = sand.u32 %s39, 1
          %s140 = scalar_lea.sflag [#allocation3], %s139
          %s141 = sand.u32 %s39, 1
          %s142 = smul.addr %s141, 4
          %s143 = scalar_lea.vmem [#allocation2], %s142
          %s145 = ssub.s32 64, 64
          %146 = vsyncadd %s140, %s145
          %s147 = smul.addr %s22, 2
          %s148 = sadd.s32 %s23, %s147
          %s149 = smul.addr %s148, 64
          %s150 = scalar_lea.hbm %s0, %s149
          %s152 = sshll.u32 %s143, 4
          %s153 = int_to_ptr.vmem [resolvable:$true] %s152
          %155 = dma.hbm_to_vmem [thread:$0]  %s150, 64, %s153, %s140
        $region24: #{tpu_custom_call.1} parent=19 // pred_fallthru
          _
      $region20: #{tpu_custom_call.1} parent=5 // pred_fallthru
        _
      %p156 = scmp.le.s32.totalorder 1, %s15
      %p157 = scmp.lt.s32.totalorder %s15, 5
      %p158 = pnand %p156, %p157
      %p159 = pneg %p158
      // Predicated region
      $region25: #{tpu_custom_call.1} parent=5 // pred_check
        _
      $region26: #{tpu_custom_call.1} parent=5 // pred_check_branch
        %161 = sbr.rel (%p158) target = $region28
      $region27: #{tpu_custom_call.1} parent=5 // pred_region
        %s162 = ssub.s32 %s15, 1
        %s163 = sand.u32 %s42, 1
        %s164 = scalar_lea.sflag [#allocation3], %s163
        %s165 = sand.u32 %s42, 1
        %s166 = smul.addr %s165, 4
        %s167 = scalar_lea.vmem [#allocation2], %s166
        // Predicated region
        $region29: #{tpu_custom_call.1} parent=27 // pred_check
          %p168 = pneg %p55
        $region30: #{tpu_custom_call.1} parent=27 // pred_check_branch
          %170 = sbr.rel (%p168) target = $region32
        $region31: #{tpu_custom_call.1} parent=27 // pred_region
          %171 = dma.done %s164, 64
        $region32: #{tpu_custom_call.1} parent=27 // pred_fallthru
          _
        // Predicated region
        $region33: #{tpu_custom_call.1} parent=27 // pred_check
          %p172 = pneg %p76
        $region34: #{tpu_custom_call.1} parent=27 // pred_check_branch
          %174 = sbr.rel (%p172) target = $region36
        $region35: #{tpu_custom_call.1} parent=27 // pred_region
          %175 = dma.done [#allocation6], 256
        $region36: #{tpu_custom_call.1} parent=27 // pred_fallthru
          _
        %s176 = sand.u32 %s42, 1
        %s177 = scalar_lea.sflag [#allocation3], %s176
        %s178 = sand.u32 %s42, 1
        %s179 = smul.addr %s178, 4
        %s180 = scalar_lea.vmem [#allocation2], %s179
        %p181 = pneg %p55
        %p182 = pneg %p52
        %p183 = pneg %p76
        %p184 = pneg %p73
        %p185 = pneg %p104
        %p186 = pneg %p101
        %s187 = sand.u32 %s91, 1
        %s188 = scalar_lea.sflag [#allocation4], %s187
        %s189 = sand.u32 %s91, 1
        %s190 = smul.addr %s189, 4
        %s191 = scalar_lea.vmem [#allocation7], %s190
        %v193 = vld [vmem:[%s167] sm:$0xf]
        %v194 = vld [vmem:[#allocation5] sm:$0xf]
        %v195 = vld [vmem:[#allocation5 + $0x4] sm:$0xf]
        %v196 = vld [vmem:[#allocation5 + $0x8] sm:$0xf]
        %v197 = vld [vmem:[#allocation5 + $0xc] sm:$0xf]
        %v202 = vunpack.c.l.b16 %v194
        %v203 = vunpack.c.l.b16 %v195
        %v204 = vunpack.c.l.b16 %v196
        %v205 = vunpack.c.l.b16 %v197
        %v206 = vpack.c.b16 %v203, %v202
        %v207 = vpack.c.b16 %v205, %v204
        %vm210 = vcmask 261120
        %v212 = vsel %vm210, %v193, 0
        %214 = vmatprep.subr.bf16.mxu0 0
        %215 = vmatpush1.bf16.msra.mxu0 0
        %216 = vmatprep.subr.bf16.mxu0 0
        %217 = vmatpush1.bf16.msra.mxu0 0
        %218 = vmatprep.subr.bf16.mxu0 0
        %219 = vmatpush1.bf16.msra.mxu0 0
        %220 = vmatprep.subr.bf16.mxu0 0
        %221 = vmatpush1.bf16.msra.mxu0 0
        %222 = vmatprep.subr.bf16.mxu0 0
        %223 = vmatpush1.bf16.msra.mxu0 0
        %224 = vmatprep.subr.bf16.mxu0 0
        %225 = vmatpush1.bf16.msra.mxu0 0
        %226 = vmatprep.subr.bf16.mxu0 0
        %227 = vmatpush1.bf16.msra.mxu0 %v207
        %228 = vmatprep.subr.bf16.mxu0 0
        %229 = vmatpush1.bf16.msra.mxu0 %v206
        %230 = vmatprep.subr.bf16.mxu0 0
        %231 = vmatpush2.bf16.msra.mxu0 0
        %232 = vmatprep.subr.bf16.mxu0 0
        %233 = vmatpush2.bf16.msra.mxu0 0
        %234 = vmatprep.subr.bf16.mxu0 0
        %235 = vmatpush2.bf16.msra.mxu0 0
        %236 = vmatprep.subr.bf16.mxu0 0
        %237 = vmatpush2.bf16.msra.mxu0 0
        %238 = vmatprep.subr.bf16.mxu0 0
        %239 = vmatpush2.bf16.msra.mxu0 0
        %240 = vmatprep.subr.bf16.mxu0 0
        %241 = vmatpush2.bf16.msra.mxu0 0
        %242 = vmatprep.subr.bf16.mxu0 0
        %243 = vmatpush2.bf16.msra.mxu0 0
        %244 = vmatprep.subr.bf16.mxu0 0
        %245 = vmatpush2.bf16.msra.mxu0 0
        %246 = vmatprep.mubr.bf16.mxu0 0
        %247 = vmatmul.mubr.bf16.gmra.mxu0 %v212
        %v248 = vpop.f32.mrf.mxu0
        %v249 = vadd.f32 0.0, %v248
        %v250 = vpop.f32.mrf.mxu0
        %v251 = vpop.f32.mrf.mxu0
        %v252 = vpop.f32.mrf.mxu0
        %253 = vdwg.mxu0
        %v254 = vpack.c.bf16 %v249, %v249
        %vm255 = vcmask 388096
        %256 = vst.msk [vmem:[%s191] sm:$0xf] %vm255, %v254
        %s257 = sand.u32 %s91, 1
        %s258 = scalar_lea.sflag [#allocation4], %s257
        %s259 = sand.u32 %s91, 1
        %s260 = smul.addr %s259, 4
        %s261 = scalar_lea.vmem [#allocation7], %s260
        // Predicated region
        $region37: #{tpu_custom_call.1} parent=27 // pred_check
          %p262 = pneg %p101
        $region38: #{tpu_custom_call.1} parent=27 // pred_check_branch
          %264 = sbr.rel (%p262) target = $region40
        $region39: #{tpu_custom_call.1} parent=27 // pred_region
          %s266 = ssub.s32 64, 64
          %267 = vsyncadd %s258, %s266
          %s268 = smul.addr %s24, 2
          %s269 = sadd.s32 %s25, %s268
          %s270 = smul.addr %s269, 64
          %s271 = scalar_lea.hbm %s2, %s270
          %s273 = sshll.u32 %s261, 4
          %s274 = int_to_ptr.vmem [resolvable:$true] %s273
          %276 = dma.vmem_to_hbm [thread:$0]  %s274, 64, %s271, %s258
        $region40: #{tpu_custom_call.1} parent=27 // pred_fallthru
          _
      $region28: #{tpu_custom_call.1} parent=5 // pred_fallthru
        _
      %p277 = scmp.le.s32.totalorder 2, %s15
      // Predicated region
      $region41: #{tpu_custom_call.1} parent=5 // pred_check
        %p278 = pneg %p277
      $region42: #{tpu_custom_call.1} parent=5 // pred_check_branch
        %280 = sbr.rel (%p278) target = $region44
      $region43: #{tpu_custom_call.1} parent=5 // pred_region
        %s281 = ssub.s32 %s15, 2
        // Predicated region
        $region45: #{tpu_custom_call.1} parent=43 // pred_check
          %p282 = pneg %p107
        $region46: #{tpu_custom_call.1} parent=43 // pred_check_branch
          %284 = sbr.rel (%p282) target = $region48
        $region47: #{tpu_custom_call.1} parent=43 // pred_region
          %s285 = sand.u32 %s92, 1
          %s286 = scalar_lea.sflag [#allocation4], %s285
          %s287 = sand.u32 %s92, 1
          %s288 = smul.addr %s287, 4
          %s289 = scalar_lea.vmem [#allocation7], %s288
          %290 = dma.done %s286, 64
        $region48: #{tpu_custom_call.1} parent=43 // pred_fallthru
          _
      $region44: #{tpu_custom_call.1} parent=5 // pred_fallthru
        _
    $region6: #{tpu_custom_call.1} parent=1 // loop_footer
      %s19 = sadd.s32 1, %s15
    $region7: #{tpu_custom_call.1} parent=1 // loop_footer_branch
      %14 = sbr.rel target = $region3
    $region8: #{tpu_custom_call.1} parent=1 // loop_exit
      _
    %291 = vsyncpa [#allocation3], 1
    %s292 = scalar_lea.sflag [#allocation3], 1
    %293 = vsyncpa %s292, 1
    %294 = vsyncpa [#allocation6], 1
    %295 = vsyncpa [#allocation4], 1
    %s296 = scalar_lea.sflag [#allocation4], 1
    %297 = vsyncpa %s296, 1

</llo_original>
